<compile_context>
chip_gen: v7x
topology: tpu7x:2x2x1
jax: 0.10.0
libtpu: 0.0.40
codegen_flags: <defaults>
</compile_context>

<pallas_src>
import functools

import jax
import jax.numpy as jnp
from jax import lax
from jax.experimental import pallas as pl
from jax.experimental.pallas import tpu as pltpu


# ----------------------------- Pallas kernel ------------------------------
def _san_rows_kernel(x_ref, s_std_ref, s_mean_ref, o_ref, *, inv_hw, eps):
    # x_ref:      (ROWS, HW_pad)  one block of flattened (B*C, HW) rows
    # s_std_ref:  (ROWS, 1)       predicted scale per row (already s_std)
    # s_mean_ref: (ROWS, 1)       predicted shift per row (already s_mean)
    x = x_ref[...].astype(jnp.float32)

    # Single-pass fused mean / variance (padded columns are zero and the
    # divisor is the TRUE spatial size, so padding does not bias the stats).
    row_sum = jnp.sum(x, axis=-1, keepdims=True)           # (ROWS, 1)
    row_sumsq = jnp.sum(x * x, axis=-1, keepdims=True)     # (ROWS, 1)
    mean = row_sum * inv_hw
    var = jnp.maximum(row_sumsq * inv_hw - mean * mean, 0.0)
    inv_std = lax.rsqrt(var + eps)                          # EUP

    # Fold mean into the shift:  (x - mean) * inv_std * s_std + s_mean
    #                          =  x * scale + shift
    scale = s_std_ref[...] * inv_std                        # (ROWS, 1)
    shift = s_mean_ref[...] - mean * scale                  # (ROWS, 1)

    # Single fused multiply-add over the full tile, lane-dense store.
    o_ref[...] = (x * scale + shift).astype(o_ref.dtype)


# ------------------------------- wrapper ----------------------------------
def _choose_rows(total_rows, hw_padded, itemsize, target_bytes=4 << 20):
    """Pick a row-block: multiple of 8, ~target_bytes per block, capped at the
    (8-padded) total number of rows.  4 MiB keeps 2x(in)+2x(out) well under
    v7x's scoped VMEM while being large enough to hit ~85% of HBM roofline."""
    rows = max(8, target_bytes // max(1, hw_padded * itemsize))
    rows = max(8, (rows // 8) * 8)
    padded_total = ((total_rows + 7) // 8) * 8
    return int(min(rows, padded_total))


def spectral_adaptive_norm(features, x, w_mean_t, b_mean, w_std_t, b_std,
                           *, eps=1e-8):
    """features: (B, Din); x: (B, C, H, W) NCHW;
    w_*_t: (Din, C) spectrally-normalized weights, transposed for feat @ W^T;
    b_*: (1, C)."""
    B, C, H, W = x.shape
    HW = H * W

    # (1) Affine-parameter prediction: ONE batched matmul for both layers.
    w_cat = jnp.concatenate([w_std_t, w_mean_t], axis=1)        # (Din, 2C)
    b_cat = jnp.concatenate([b_std, b_mean], axis=1)            # (1, 2C)
    s = jnp.dot(features, w_cat,
                preferred_element_type=jnp.float32) + b_cat     # (B, 2C)
    s_std = s[:, :C].reshape(B * C, 1).astype(jnp.float32)      # (B*C, 1)
    s_mean = s[:, C:].reshape(B * C, 1).astype(jnp.float32)     # (B*C, 1)

    # (2) Lane-dense row layout: rows = B*C, lanes = HW padded to 128.
    hw_pad = ((HW + 127) // 128) * 128
    x_rows = x.reshape(B * C, HW)
    if hw_pad != HW:
        x_rows = jnp.pad(x_rows, ((0, 0), (0, hw_pad - HW)))

    total_rows = B * C
    itemsize = jnp.dtype(x.dtype).itemsize
    rows_blk = _choose_rows(total_rows, hw_pad, itemsize)
    padded_rows = pl.cdiv(total_rows, rows_blk) * rows_blk
    if padded_rows != total_rows:
        pad_r = padded_rows - total_rows
        x_rows = jnp.pad(x_rows, ((0, pad_r), (0, 0)))
        s_std = jnp.pad(s_std, ((0, pad_r), (0, 0)))
        s_mean = jnp.pad(s_mean, ((0, pad_r), (0, 0)))

    kernel = functools.partial(_san_rows_kernel, inv_hw=1.0 / HW, eps=eps)

    out = pl.pallas_call(
        kernel,
        out_shape=jax.ShapeDtypeStruct((padded_rows, hw_pad), x.dtype),
        grid_spec=pltpu.PrefetchScalarGridSpec(
            num_scalar_prefetch=0,
            grid=(padded_rows // rows_blk,),
            in_specs=[
                pl.BlockSpec((rows_blk, hw_pad), lambda i: (i, 0)),  # x rows
                pl.BlockSpec((rows_blk, 1), lambda i: (i, 0)),       # s_std
                pl.BlockSpec((rows_blk, 1), lambda i: (i, 0)),       # s_mean
            ],
            out_specs=pl.BlockSpec((rows_blk, hw_pad), lambda i: (i, 0)),
        ),
        compiler_params=pltpu.CompilerParams(
            dimension_semantics=("parallel",),        # 2-TC split on v7x
            vmem_limit_bytes=48 * 1024 * 1024,        # < v7x 64 MiB physical
        ),
    )(x_rows, s_std, s_mean)

    return out[:total_rows, :HW].reshape(B, C, H, W)


# ---------------- parameter setup (plain JAX glue, not the kernel) ----------
def spectral_normalize(w, u0):
    """One power-iteration step of torch.nn.utils.spectral_norm.
    w: (dim_out, dim_in), u0: (dim_out,)."""
    # TODO(synk): torch's spectral_norm persists/updates u across forward
    # passes; this deterministic single-iteration glue does not.
    def l2n(v):
        return v / (jnp.linalg.norm(v) + 1e-12)
    v = l2n(w.T @ u0)
    u = l2n(w @ v)
    sigma = u @ (w @ v)
    return w / sigma


def make_linear_params(key, dim_in, dim_out):
    """Deterministic PyTorch-Linear-style init + spectral normalization."""
    kw, kb, ku = jax.random.split(key, 3)
    bound = 1.0 / jnp.sqrt(dim_in)
    w = jax.random.uniform(kw, (dim_out, dim_in), jnp.float32, -bound, bound)
    b = jax.random.uniform(kb, (dim_out,), jnp.float32, -bound, bound)
    u0 = jax.random.normal(ku, (dim_out,), jnp.float32)
    u0 = u0 / (jnp.linalg.norm(u0) + 1e-12)
    w_sn = spectral_normalize(w, u0)
    # return transposed weight (Din, Dout) so the wrapper does feat @ W^T
    return w_sn.T, b.reshape(1, dim_out)


def reference(features, x, w_mean_t, b_mean, w_std_t, b_std):
    B, C, H, W = x.shape
    s_mean = features @ w_mean_t + b_mean
    s_std = features @ w_std_t + b_std
    xf = x.reshape(B, C, H * W)
    mean = xf.mean(axis=2, keepdims=True)
    xc = xf - mean
    std = lax.rsqrt((xc ** 2).mean(axis=2, keepdims=True) + 1e-8)
    nf = (xc * std).reshape(B, C, H, W)
    return nf * s_std[..., None, None] + s_mean[..., None, None]


if __name__ == "__main__":
    B, Din, C, H, W = 2, 8, 4, 16, 16

    key = jax.random.PRNGKey(0)
    k_feat, k_x, k_mean, k_std = jax.random.split(key, 4)

    features = jax.random.normal(k_feat, (B, Din), jnp.float32)
    x = jax.random.normal(k_x, (B, C, H, W), jnp.float32)  # NCHW, like PyTorch

    w_mean_t, b_mean = make_linear_params(k_mean, Din, C)
    w_std_t, b_std = make_linear_params(k_std, Din, C)

    out = spectral_adaptive_norm(features, x, w_mean_t, b_mean, w_std_t, b_std)
    out = jax.block_until_ready(out)

    ref = reference(features, x, w_mean_t, b_mean, w_std_t, b_std)
    assert out.shape == (B, C, H, W)
    assert jnp.allclose(out, ref, atol=1e-4, rtol=1e-4), "mismatch vs reference"

    print("KERNEL_OK")
</pallas_src>

<mosaic_0001>
module attributes {stable_mosaic.version = 11 : i64} {
  func.func @_san_rows_kernel(%arg0: i32, %arg1: memref<8x256xf32, #tpu.memory_space<vmem>>, %arg2: memref<8x1xf32, #tpu.memory_space<vmem>>, %arg3: memref<8x1xf32, #tpu.memory_space<vmem>>, %arg4: memref<8x256xf32, #tpu.memory_space<vmem>>) attributes {dimension_semantics = [#tpu.dimension_semantics<parallel>], iteration_bounds = array<i64: 1>, scalar_prefetch = 0 : i64, scratch_operands = 0 : i64, tpu.core_type = #tpu.core_type<tc>, window_params = [{transform_indices = @transform_0, window_bounds = array<i64: 8, 256>}, {transform_indices = @transform_1, window_bounds = array<i64: 8, 1>}, {transform_indices = @transform_2, window_bounds = array<i64: 8, 1>}, {transform_indices = @transform_3, window_bounds = array<i64: 8, 256>}]} {
    %c0 = arith.constant 0 : index
    %c0_0 = arith.constant 0 : index
    %0 = vector.load %arg1[%c0, %c0_0] : memref<8x256xf32, #tpu.memory_space<vmem>>, vector<8x256xf32>
    %cst = arith.constant dense<0.000000e+00> : vector<8xf32>
    %1 = vector.multi_reduction <add>, %0, %cst [1] : vector<8x256xf32> to vector<8xf32>
    %2 = vector.shape_cast %1 : vector<8xf32> to vector<8x1xf32>
    %3 = arith.mulf %0, %0 : vector<8x256xf32>
    %cst_1 = arith.constant dense<0.000000e+00> : vector<8xf32>
    %4 = vector.multi_reduction <add>, %3, %cst_1 [1] : vector<8x256xf32> to vector<8xf32>
    %5 = vector.shape_cast %4 : vector<8xf32> to vector<8x1xf32>
    %cst_2 = arith.constant 3.906250e-03 : f32
    %6 = vector.broadcast %cst_2 : f32 to vector<8x1xf32>
    %7 = arith.mulf %2, %6 : vector<8x1xf32>
    %cst_3 = arith.constant 3.906250e-03 : f32
    %8 = vector.broadcast %cst_3 : f32 to vector<8x1xf32>
    %9 = arith.mulf %5, %8 : vector<8x1xf32>
    %10 = arith.mulf %7, %7 : vector<8x1xf32>
    %11 = arith.subf %9, %10 : vector<8x1xf32>
    %cst_4 = arith.constant 0.000000e+00 : f32
    %12 = vector.broadcast %cst_4 : f32 to vector<8x1xf32>
    %13 = arith.maximumf %11, %12 : vector<8x1xf32>
    %cst_5 = arith.constant 9.99999993E-9 : f32
    %14 = vector.broadcast %cst_5 : f32 to vector<8x1xf32>
    %15 = arith.addf %13, %14 : vector<8x1xf32>
    %16 = math.rsqrt %15 : vector<8x1xf32>
    %c0_6 = arith.constant 0 : index
    %c0_7 = arith.constant 0 : index
    %17 = vector.load %arg2[%c0_6, %c0_7] : memref<8x1xf32, #tpu.memory_space<vmem>>, vector<8x1xf32>
    %18 = arith.mulf %17, %16 : vector<8x1xf32>
    %c0_8 = arith.constant 0 : index
    %c0_9 = arith.constant 0 : index
    %19 = vector.load %arg3[%c0_8, %c0_9] : memref<8x1xf32, #tpu.memory_space<vmem>>, vector<8x1xf32>
    %20 = arith.mulf %7, %18 : vector<8x1xf32>
    %21 = arith.subf %19, %20 : vector<8x1xf32>
    %22 = vector.broadcast %18 : vector<8x1xf32> to vector<8x256xf32>
    %23 = arith.mulf %0, %22 : vector<8x256xf32>
    %24 = vector.broadcast %21 : vector<8x1xf32> to vector<8x256xf32>
    %25 = arith.addf %23, %24 : vector<8x256xf32>
    %c0_10 = arith.constant 0 : index
    %c0_11 = arith.constant 0 : index
    %26 = vector.load %arg4[%c0_10, %c0_11] : memref<8x256xf32, #tpu.memory_space<vmem>>, vector<8x256xf32>
    tpu.vector_store %arg4[%c0_10, %c0_11], %25 {strides = array<i32>} : memref<8x256xf32, #tpu.memory_space<vmem>>, vector<8x256xf32>,
    return
  }
  func.func @transform_0(%arg0: i32) -> (i32, i32) {
    %c0_i32 = arith.constant 0 : i32
    %c0_i32_0 = arith.constant 0 : i32
    return %arg0, %c0_i32 : i32, i32
  }
  func.func @transform_1(%arg0: i32) -> (i32, i32) {
    %c0_i32 = arith.constant 0 : i32
    %c0_i32_0 = arith.constant 0 : i32
    return %arg0, %c0_i32 : i32, i32
  }
  func.func @transform_2(%arg0: i32) -> (i32, i32) {
    %c0_i32 = arith.constant 0 : i32
    %c0_i32_0 = arith.constant 0 : i32
    return %arg0, %c0_i32 : i32, i32
  }
  func.func @transform_3(%arg0: i32) -> (i32, i32) {
    %c0_i32 = arith.constant 0 : i32
    %c0_i32_0 = arith.constant 0 : i32
    return %arg0, %c0_i32 : i32, i32
  }
}

</mosaic_0001>

<llo_original>
// kernel: tpu_custom_call.1
$region0: #{tpu_custom_call.1}
  #allocation0 [shape = 'u32[]', space=smem, size = 0x4, offset = 0x4, fixed_abs, tag = 'smem constant byte address 0x4 - core index']
  #allocation1 [shape = 'u32[144,128]{1,0:T(1,128)}', space=vmem, size = 0x12000, scoped, tag = 'internal scratch']
  %s0 = inlined_call_operand.vmem [shape: f32[8,256], index: 0, kind: input, shape index: {}]
  %s1 = inlined_call_operand.vmem [shape: f32[8,1], index: 1, kind: input, shape index: {}]
  %s2 = inlined_call_operand.vmem [shape: f32[8,1], index: 2, kind: input, shape index: {}]
  %s3 = inlined_call_operand.hbm [shape: f32[8,256], index: 3, kind: output, shape index: {}]
  %s4 = sld [smem:[#allocation0]]
  $region22: #{tpu_custom_call.1} parent=0
    _
  %s6 = ssub.s32 1, %s4
  %s7 = scalar_select 0, %s6, %s4
  $region1: #{tpu_custom_call.1} parent=0
    #allocation2 [shape = 'u8[8192]{0}', space=vmem, size = 0x2000, scoped, tag = 'output window, operand 0, single buffered']
    #allocation3 [shape = 's32[1]{0}', space=sflag, size = 0x4, scoped, tag = 'scoped memory for tpu_custom_call.1']
    %8 = vsyncpa [#allocation3], 0
    // Predicated region
    $region2: #{tpu_custom_call.1} parent=1 // pred_check
      _
    $region3: #{tpu_custom_call.1} parent=1 // pred_check_branch
      %10 = sbr.rel (0) target = $region5
    $region4: #{tpu_custom_call.1} parent=1 // pred_region
      _
    $region5: #{tpu_custom_call.1} parent=1 // pred_fallthru
      _
    // Predicated region
    $region6: #{tpu_custom_call.1} parent=1 // pred_check
      _
    $region7: #{tpu_custom_call.1} parent=1 // pred_check_branch
      %12 = sbr.rel (0) target = $region9
    $region8: #{tpu_custom_call.1} parent=1 // pred_region
      _
    $region9: #{tpu_custom_call.1} parent=1 // pred_fallthru
      _
    // Predicated region
    $region10: #{tpu_custom_call.1} parent=1 // pred_check
      _
    $region11: #{tpu_custom_call.1} parent=1 // pred_check_branch
      %14 = sbr.rel (0) target = $region13
    $region12: #{tpu_custom_call.1} parent=1 // pred_region
      _
    $region13: #{tpu_custom_call.1} parent=1 // pred_fallthru
      _
    %v15 = vld [vmem:[%s0] sm:$0xff]
    %v16 = vld [vmem:[%s0 + $0x8] sm:$0xff]
    %v17 = vadd.f32 %v15, %v16
    %18 = vadd.xlane.f32.xlu0 %v17
    %v19 = vpop.xlane.xlu0 %18
    %v20 = vmul.f32 %v15, %v15
    %v21 = vmul.f32 %v16, %v16
    %v22 = vadd.f32 %v20, %v21
    %23 = vadd.xlane.f32.xlu0 %v22
    %v24 = vpop.xlane.xlu0 %23
    %v25 = vmul.f32 %v19, 0.00390625
    %v26 = vmul.f32 %v24, 0.00390625
    %v27 = vmul.f32 %v25, %v25
    %v28 = vsub.f32 %v26, %v27
    %v29 = vmax.f32 %v28, 0.0
    %v30 = vadd.f32 %v29, 1e-08
    %v31 = vrsqrt.pop %v30
    %v32 = vld [vmem:[%s1] sm:$0xff]
    %v33 = vmul.f32 %v32, %v31
    %v34 = vld [vmem:[%s2] sm:$0xff]
    %v35 = vmul.f32 %v25, %v33
    %v36 = vsub.f32 %v34, %v35
    %38 = vset.pattern.permute.xlu0 0
    %39 = vperm.xlu0 %38, %v33
    %v40 = vpop.permute.xlu0 %39
    %v42 = vmul.f32 %v15, %v40
    %v43 = vmul.f32 %v16, %v40
    %45 = vset.pattern.permute.xlu0 0
    %46 = vperm.xlu0 %45, %v36
    %v47 = vpop.permute.xlu0 %46
    %v49 = vadd.f32 %v42, %v47
    %v50 = vadd.f32 %v43, %v47
    %51 = vst [vmem:[#allocation2] sm:$0xff] %v49
    %52 = vst [vmem:[#allocation2 + $0x8] sm:$0xff] %v50
    // Predicated region
    $region14: #{tpu_custom_call.1} parent=1 // pred_check
      _
    $region15: #{tpu_custom_call.1} parent=1 // pred_check_branch
      %54 = sbr.rel (0) target = $region17
    $region16: #{tpu_custom_call.1} parent=1 // pred_region
      %s56 = ssub.s32 256, 256
      %57 = vsyncadd [#allocation3], %s56
      %s59 = sshll.u32 [#allocation2], 4
      %s60 = int_to_ptr.vmem [resolvable:$true] %s59
      %62 = dma.vmem_to_hbm [thread:$0]  %s60, 256, %s3, [#allocation3]
    $region17: #{tpu_custom_call.1} parent=1 // pred_fallthru
      _
    // Predicated region
    $region18: #{tpu_custom_call.1} parent=1 // pred_check
      _
    $region19: #{tpu_custom_call.1} parent=1 // pred_check_branch
      %64 = sbr.rel (0) target = $region21
    $region20: #{tpu_custom_call.1} parent=1 // pred_region
      %65 = dma.done [#allocation3], 256
    $region21: #{tpu_custom_call.1} parent=1 // pred_fallthru
      _
    %66 = vsyncpa [#allocation3], 1

</llo_original>
